<compile_context>
chip_gen: v7x
topology: tpu7x:2x2x1
jax: 0.10.0
libtpu: 0.0.40
codegen_flags: <defaults>
</compile_context>

<pallas_src>
import jax
import jax.numpy as jnp
from jax.experimental import pallas as pl
from jax.experimental.pallas import tpu as pltpu


# ----------------------------------------------------------------------------
# Fused ForHead kernel (one N-tile; default = whole N in a single step):
#   sigmoid( sigmoid(x @ W_in + b_in) @ W_tr + b_tr )
# bf16 matmul operands, f32 accumulation, f32 epilogue.
# ----------------------------------------------------------------------------
def _forhead_kernel(x_ref, win_ref, bin_ref, wtr_ref, btr_ref, o_ref):
    # inlayer: (B, M) @ (M, M), bf16 operands -> f32 accumulate.
    h = jnp.dot(x_ref[...], win_ref[...], preferred_element_type=jnp.float32)
    h = jax.nn.sigmoid(h + bin_ref[...])                      # f32 epilogue
    # translayer (current N tile): (B, M) @ (M, tn), bf16 operands -> f32 acc.
    y = jnp.dot(h.astype(wtr_ref.dtype), wtr_ref[...],
                preferred_element_type=jnp.float32)
    o_ref[...] = jax.nn.sigmoid(y + btr_ref[...]).astype(o_ref.dtype)


def forhead(x, params, *, tn=None):
    """ForHead forward. x: (B, M) -> (B, 1, 32, 32).

    tn=None (default): single grid step, whole problem resident in VMEM.
    tn=512: two grid steps marked "parallel" (feeds both v7x TensorCores).
    """
    B, M = x.shape
    win = params["in_w"]        # (M, M)    bf16, pre-transposed (identity at init)
    b_in = params["in_b"]       # (M,)      f32
    wtr = params["trans_w"]     # (M, 1024) bf16, pre-transposed
    b_tr = params["trans_b"]    # (1024,)   f32
    N = wtr.shape[1]
    assert N == 32 * 32
    if tn is None:
        tn = N                  # collapsed grid: one step
    assert N % tn == 0 and tn % 128 == 0

    out = pl.pallas_call(
        _forhead_kernel,
        out_shape=jax.ShapeDtypeStruct((B, N), jnp.float32),
        grid=(N // tn,),
        in_specs=[
            pl.BlockSpec((B, M), lambda j: (0, 0)),    # x     (full extent)
            pl.BlockSpec((M, M), lambda j: (0, 0)),    # W_in  (full extent)
            pl.BlockSpec((1, M), lambda j: (0, 0)),    # b_in
            pl.BlockSpec((M, tn), lambda j: (0, j)),   # W_tr  N tile
            pl.BlockSpec((1, tn), lambda j: (0, j)),   # b_tr  N tile
        ],
        out_specs=pl.BlockSpec((B, tn), lambda j: (0, j)),
        compiler_params=pltpu.CompilerParams(
            dimension_semantics=("parallel",)),
    )(x.astype(jnp.bfloat16), win, b_in.reshape(1, M).astype(jnp.float32),
      wtr, b_tr.reshape(1, N).astype(jnp.float32))
    return out.reshape(B, 1, 32, 32)


# ----------------------------------------------------------------------------
# Deterministic parameter init (weights pre-transposed (in, out), stored bf16;
# biases f32).
# ----------------------------------------------------------------------------
def init_params(key, M):
    k1, k2 = jax.random.split(key)
    bound = 1.0 / (M ** 0.5)   # PyTorch Linear default init range
    return {
        # ForHead.__init__ forces inlayer to identity weight / zero bias
        # (identity is exact in bf16).
        "in_w": jnp.eye(M, dtype=jnp.bfloat16),
        "in_b": jnp.zeros((M,), jnp.float32),
        "trans_w": jax.random.uniform(
            k1, (M, 1024), jnp.float32, -bound, bound).astype(jnp.bfloat16),
        "trans_b": jax.random.uniform(k2, (1024,), jnp.float32, -bound, bound),
    }


if __name__ == "__main__":
    M, B = 128, 2
    key = jax.random.PRNGKey(0)
    kx, kp = jax.random.split(key)
    params = init_params(kp, M)
    x = jax.random.normal(kx, (B, M), jnp.float32)

    fwd = jax.jit(forhead)
    out = jax.block_until_ready(fwd(x, params))

    assert out.shape == (B, 1, 32, 32), out.shape
    assert bool(jnp.all(jnp.isfinite(out)))

    # Pure-JAX reference with the SAME bf16 operand rounding / f32 accumulation.
    xb = x.astype(jnp.bfloat16)
    h = jax.nn.sigmoid(
        jnp.dot(xb, params["in_w"], preferred_element_type=jnp.float32)
        + params["in_b"])
    ref = jax.nn.sigmoid(
        jnp.dot(h.astype(jnp.bfloat16), params["trans_w"],
                preferred_element_type=jnp.float32)
        + params["trans_b"]).reshape(B, 1, 32, 32)
    assert bool(jnp.allclose(out, ref, atol=1e-4, rtol=1e-4))

    # Looser sanity check vs. the full-f32 math (operand rounding only).
    hf = jax.nn.sigmoid(x @ params["in_w"].astype(jnp.float32) + params["in_b"])
    ref_f32 = jax.nn.sigmoid(
        hf @ params["trans_w"].astype(jnp.float32) + params["trans_b"]
    ).reshape(B, 1, 32, 32)
    assert bool(jnp.allclose(out, ref_f32, atol=5e-2, rtol=5e-2))

    print("KERNEL_OK")
</pallas_src>

<mosaic_0001>
module attributes {stable_mosaic.version = 11 : i64} {
  func.func @_forhead_kernel(%arg0: i32, %arg1: memref<2x128xbf16, #tpu.memory_space<vmem>>, %arg2: memref<128x128xbf16, #tpu.memory_space<vmem>>, %arg3: memref<1x128xf32, #tpu.memory_space<vmem>>, %arg4: memref<128x1024xbf16, #tpu.memory_space<vmem>>, %arg5: memref<1x1024xf32, #tpu.memory_space<vmem>>, %arg6: memref<2x1024xf32, #tpu.memory_space<vmem>>) attributes {dimension_semantics = [#tpu.dimension_semantics<parallel>], iteration_bounds = array<i64: 1>, scalar_prefetch = 0 : i64, scratch_operands = 0 : i64, tpu.core_type = #tpu.core_type<tc>, window_params = [{pipeline_mode = #tpu.pipeline_mode<synchronous>, transform_indices = @transform_0, window_bounds = array<i64: 2, 128>}, {pipeline_mode = #tpu.pipeline_mode<synchronous>, transform_indices = @transform_1, window_bounds = array<i64: 128, 128>}, {pipeline_mode = #tpu.pipeline_mode<synchronous>, transform_indices = @transform_2, window_bounds = array<i64: 1, 128>}, {transform_indices = @transform_3, window_bounds = array<i64: 128, 1024>}, {transform_indices = @transform_4, window_bounds = array<i64: 1, 1024>}, {transform_indices = @transform_5, window_bounds = array<i64: 2, 1024>}]} {
    %c0 = arith.constant 0 : index
    %c0_0 = arith.constant 0 : index
    %0 = vector.load %arg1[%c0, %c0_0] : memref<2x128xbf16, #tpu.memory_space<vmem>>, vector<2x128xbf16>
    %c0_1 = arith.constant 0 : index
    %c0_2 = arith.constant 0 : index
    %1 = vector.load %arg2[%c0_1, %c0_2] : memref<128x128xbf16, #tpu.memory_space<vmem>>, vector<128x128xbf16>
    %cst = arith.constant dense<0.000000e+00> : vector<2x128xf32>
    %2 = tpu.matmul %0, %1, %cst {dimension_numbers = #tpu.dot_dimension_numbers<[1], [0], [0], [1], [0, 0, 1, 1], [], []>} : vector<2x128xbf16>, vector<128x128xbf16>, vector<2x128xf32> -> vector<2x128xf32>
    %c0_3 = arith.constant 0 : index
    %c0_4 = arith.constant 0 : index
    %3 = vector.load %arg3[%c0_3, %c0_4] : memref<1x128xf32, #tpu.memory_space<vmem>>, vector<1x128xf32>
    %4 = vector.broadcast %3 : vector<1x128xf32> to vector<2x128xf32>
    %5 = arith.addf %2, %4 : vector<2x128xf32>
    %6 = arith.negf %5 : vector<2x128xf32>
    %7 = math.exp %6 : vector<2x128xf32>
    %cst_5 = arith.constant 1.000000e+00 : f32
    %8 = vector.broadcast %cst_5 : f32 to vector<2x128xf32>
    %9 = arith.addf %8, %7 : vector<2x128xf32>
    %10 = arith.divf %8, %9 : vector<2x128xf32>
    %11 = arith.truncf %10 : vector<2x128xf32> to vector<2x128xbf16>
    %c0_6 = arith.constant 0 : index
    %c0_7 = arith.constant 0 : index
    %12 = vector.load %arg4[%c0_6, %c0_7] : memref<128x1024xbf16, #tpu.memory_space<vmem>>, vector<128x1024xbf16>
    %cst_8 = arith.constant dense<0.000000e+00> : vector<2x1024xf32>
    %13 = tpu.matmul %11, %12, %cst_8 {dimension_numbers = #tpu.dot_dimension_numbers<[1], [0], [0], [1], [0, 0, 1, 1], [], []>} : vector<2x128xbf16>, vector<128x1024xbf16>, vector<2x1024xf32> -> vector<2x1024xf32>
    %c0_9 = arith.constant 0 : index
    %c0_10 = arith.constant 0 : index
    %14 = vector.load %arg5[%c0_9, %c0_10] : memref<1x1024xf32, #tpu.memory_space<vmem>>, vector<1x1024xf32>
    %15 = vector.broadcast %14 : vector<1x1024xf32> to vector<2x1024xf32>
    %16 = arith.addf %13, %15 : vector<2x1024xf32>
    %17 = arith.negf %16 : vector<2x1024xf32>
    %18 = math.exp %17 : vector<2x1024xf32>
    %cst_11 = arith.constant 1.000000e+00 : f32
    %19 = vector.broadcast %cst_11 : f32 to vector<2x1024xf32>
    %20 = arith.addf %19, %18 : vector<2x1024xf32>
    %21 = arith.divf %19, %20 : vector<2x1024xf32>
    %c0_12 = arith.constant 0 : index
    %c0_13 = arith.constant 0 : index
    %22 = vector.load %arg6[%c0_12, %c0_13] : memref<2x1024xf32, #tpu.memory_space<vmem>>, vector<2x1024xf32>
    tpu.vector_store %arg6[%c0_12, %c0_13], %21 {strides = array<i32>} : memref<2x1024xf32, #tpu.memory_space<vmem>>, vector<2x1024xf32>,
    return
  }
  func.func @transform_0(%arg0: i32) -> (i32, i32) {
    %c0_i32 = arith.constant 0 : i32
    %c0_i32_0 = arith.constant 0 : i32
    %c0_i32_1 = arith.constant 0 : i32
    return %c0_i32, %c0_i32_0 : i32, i32
  }
  func.func @transform_1(%arg0: i32) -> (i32, i32) {
    %c0_i32 = arith.constant 0 : i32
    %c0_i32_0 = arith.constant 0 : i32
    %c0_i32_1 = arith.constant 0 : i32
    return %c0_i32, %c0_i32_0 : i32, i32
  }
  func.func @transform_2(%arg0: i32) -> (i32, i32) {
    %c0_i32 = arith.constant 0 : i32
    %c0_i32_0 = arith.constant 0 : i32
    %c0_i32_1 = arith.constant 0 : i32
    return %c0_i32, %c0_i32_0 : i32, i32
  }
  func.func @transform_3(%arg0: i32) -> (i32, i32) {
    %c0_i32 = arith.constant 0 : i32
    %c0_i32_0 = arith.constant 0 : i32
    return %c0_i32, %arg0 : i32, i32
  }
  func.func @transform_4(%arg0: i32) -> (i32, i32) {
    %c0_i32 = arith.constant 0 : i32
    %c0_i32_0 = arith.constant 0 : i32
    return %c0_i32, %arg0 : i32, i32
  }
  func.func @transform_5(%arg0: i32) -> (i32, i32) {
    %c0_i32 = arith.constant 0 : i32
    %c0_i32_0 = arith.constant 0 : i32
    return %c0_i32, %arg0 : i32, i32
  }
}

</mosaic_0001>

<llo_original>
// kernel: forhead.1
$region0: #{forhead.1}
  #allocation0 [shape = 'u32[]', space=smem, size = 0x4, offset = 0x4, fixed_abs, tag = 'smem constant byte address 0x4 - core index']
  #allocation1 [shape = 'u32[144,128]{1,0:T(1,128)}', space=vmem, size = 0x12000, scoped, tag = 'internal scratch']
  %s0 = inlined_call_operand.vmem [shape: bf16[2,128], index: 0, kind: input, shape index: {}]
  %s1 = inlined_call_operand.hbm [shape: bf16[128,128], index: 1, kind: input, shape index: {}]
  %s2 = inlined_call_operand.vmem [shape: f32[1,128], index: 2, kind: input, shape index: {}]
  %s3 = inlined_call_operand.hbm [shape: bf16[128,1024], index: 3, kind: input, shape index: {}]
  %s4 = inlined_call_operand.vmem [shape: f32[1,1024], index: 4, kind: input, shape index: {}]
  %s5 = inlined_call_operand.vmem [shape: f32[2,1024], index: 5, kind: output, shape index: {}]
  %s6 = sld [smem:[#allocation0]]
  $region38: #{forhead.1} parent=0
    _
  %s8 = ssub.s32 1, %s6
  %s9 = scalar_select 0, %s8, %s6
  $region1: #{forhead.1} parent=0
    #allocation2 [shape = 'u8[32768]{0}', space=vmem, size = 0x8000, scoped, tag = 'input window, operand 1, single buffered']
    #allocation3 [shape = 's32[1]{0}', space=sflag, size = 0x4, scoped, tag = 'scoped memory for forhead.1']
    #allocation4 [shape = 'u8[262144]{0}', space=vmem, size = 0x40000, scoped, tag = 'input window, operand 3, single buffered']
    #allocation5 [shape = 's32[1]{0}', space=sflag, size = 0x4, scoped, tag = 'scoped memory for forhead.1']
    %10 = vsyncpa [#allocation3], 0
    %11 = vsyncpa [#allocation5], 0
    // Predicated region
    $region2: #{forhead.1} parent=1 // pred_check
      _
    $region3: #{forhead.1} parent=1 // pred_check_branch
      %13 = sbr.rel (0) target = $region5
    $region4: #{forhead.1} parent=1 // pred_region
      _
    $region5: #{forhead.1} parent=1 // pred_fallthru
      _
    // Predicated region
    $region6: #{forhead.1} parent=1 // pred_check
      _
    $region7: #{forhead.1} parent=1 // pred_check_branch
      %15 = sbr.rel (0) target = $region9
    $region8: #{forhead.1} parent=1 // pred_region
      %s17 = ssub.s32 1024, 1024
      %18 = vsyncadd [#allocation3], %s17
      %s19 = sshll.u32 [#allocation2], 4
      %s20 = int_to_ptr.vmem [resolvable:$true] %s19
      %25 = dma.hbm_to_vmem [thread:$0]  %s1, 1024, %s20, [#allocation3], 64, 64, 4
    $region9: #{forhead.1} parent=1 // pred_fallthru
      _
    // Predicated region
    $region10: #{forhead.1} parent=1 // pred_check
      _
    $region11: #{forhead.1} parent=1 // pred_check_branch
      %27 = sbr.rel (0) target = $region13
    $region12: #{forhead.1} parent=1 // pred_region
      _
    $region13: #{forhead.1} parent=1 // pred_fallthru
      _
    // Predicated region
    $region14: #{forhead.1} parent=1 // pred_check
      _
    $region15: #{forhead.1} parent=1 // pred_check_branch
      %29 = sbr.rel (0) target = $region17
    $region16: #{forhead.1} parent=1 // pred_region
      %s31 = ssub.s32 8192, 8192
      %32 = vsyncadd [#allocation5], %s31
      %s33 = sshll.u32 [#allocation4], 4
      %s34 = int_to_ptr.vmem [resolvable:$true] %s33
      %39 = dma.hbm_to_vmem [thread:$0]  %s3, 8192, %s34, [#allocation5], 512, 512, 32
    $region17: #{forhead.1} parent=1 // pred_fallthru
      _
    // Predicated region
    $region18: #{forhead.1} parent=1 // pred_check
      _
    $region19: #{forhead.1} parent=1 // pred_check_branch
      %41 = sbr.rel (0) target = $region21
    $region20: #{forhead.1} parent=1 // pred_region
      _
    $region21: #{forhead.1} parent=1 // pred_fallthru
      _
    // Predicated region
    $region22: #{forhead.1} parent=1 // pred_check
      _
    $region23: #{forhead.1} parent=1 // pred_check_branch
      %43 = sbr.rel (0) target = $region25
    $region24: #{forhead.1} parent=1 // pred_region
      %44 = dma.done [#allocation3], 1024
    $region25: #{forhead.1} parent=1 // pred_fallthru
      _
    // Predicated region
    $region26: #{forhead.1} parent=1 // pred_check
      _
    $region27: #{forhead.1} parent=1 // pred_check_branch
      %46 = sbr.rel (0) target = $region29
    $region28: #{forhead.1} parent=1 // pred_region
      %47 = dma.done [#allocation5], 8192
    $region29: #{forhead.1} parent=1 // pred_fallthru
      _
    %v49 = vld [vmem:[%s0] sm:$0x1]
    %v50 = vld [vmem:[#allocation2] sm:$0xf]
    %v51 = vld [vmem:[#allocation2 + $0x4] sm:$0xf]
    %v52 = vld [vmem:[#allocation2 + $0x8] sm:$0xf]
    %v53 = vld [vmem:[#allocation2 + $0xc] sm:$0xf]
    %v54 = vld [vmem:[#allocation2 + $0x10] sm:$0xf]
    %v55 = vld [vmem:[#allocation2 + $0x14] sm:$0xf]
    %v56 = vld [vmem:[#allocation2 + $0x18] sm:$0xf]
    %v57 = vld [vmem:[#allocation2 + $0x1c] sm:$0xf]
    %v58 = vld [vmem:[#allocation2 + $0x20] sm:$0xf]
    %v59 = vld [vmem:[#allocation2 + $0x24] sm:$0xf]
    %v60 = vld [vmem:[#allocation2 + $0x28] sm:$0xf]
    %v61 = vld [vmem:[#allocation2 + $0x2c] sm:$0xf]
    %v62 = vld [vmem:[#allocation2 + $0x30] sm:$0xf]
    %v63 = vld [vmem:[#allocation2 + $0x34] sm:$0xf]
    %v64 = vld [vmem:[#allocation2 + $0x38] sm:$0xf]
    %v65 = vld [vmem:[#allocation2 + $0x3c] sm:$0xf]
    %v66 = vld [vmem:[%s2] sm:$0x1]
    %v68 = vlaneseq
    %v69 = vshrl.u32 %v68, 7
    %v70 = vsub.s32 0, %v69
    %v71 = vrot.slane %v66, %v70
    %v89 = vunpack.c.l.b16 %v50
    %v90 = vunpack.c.l.b16 %v51
    %v91 = vunpack.c.l.b16 %v52
    %v92 = vunpack.c.l.b16 %v53
    %v93 = vunpack.c.l.b16 %v54
    %v94 = vunpack.c.l.b16 %v55
    %v95 = vunpack.c.l.b16 %v56
    %v96 = vunpack.c.l.b16 %v57
    %v97 = vunpack.c.l.b16 %v58
    %v98 = vunpack.c.l.b16 %v59
    %v99 = vunpack.c.l.b16 %v60
    %v100 = vunpack.c.l.b16 %v61
    %v101 = vunpack.c.l.b16 %v62
    %v102 = vunpack.c.l.b16 %v63
    %v103 = vunpack.c.l.b16 %v64
    %v104 = vunpack.c.l.b16 %v65
    %v105 = vpack.c.b16 %v90, %v89
    %v106 = vpack.c.b16 %v92, %v91
    %v107 = vpack.c.b16 %v94, %v93
    %v108 = vpack.c.b16 %v96, %v95
    %v109 = vpack.c.b16 %v98, %v97
    %v110 = vpack.c.b16 %v100, %v99
    %v111 = vpack.c.b16 %v102, %v101
    %v112 = vpack.c.b16 %v104, %v103
    %121 = vmatprep.subr.bf16.mxu0 0
    %122 = vmatpush1.bf16.msra.mxu0 %v105
    %123 = vmatprep.subr.bf16.mxu0 0
    %124 = vmatpush1.bf16.msra.mxu0 %v106
    %125 = vmatprep.subr.bf16.mxu0 0
    %126 = vmatpush1.bf16.msra.mxu0 %v107
    %127 = vmatprep.subr.bf16.mxu0 0
    %128 = vmatpush1.bf16.msra.mxu0 %v108
    %129 = vmatprep.subr.bf16.mxu0 0
    %130 = vmatpush1.bf16.msra.mxu0 %v109
    %131 = vmatprep.subr.bf16.mxu0 0
    %132 = vmatpush1.bf16.msra.mxu0 %v110
    %133 = vmatprep.subr.bf16.mxu0 0
    %134 = vmatpush1.bf16.msra.mxu0 %v111
    %135 = vmatprep.subr.bf16.mxu0 0
    %136 = vmatpush1.bf16.msra.mxu0 %v112
    %137 = vmatprep.subr.bf16.mxu0 0
    %138 = vmatpush1.bf16.msra.mxu0 0
    %139 = vmatprep.subr.bf16.mxu0 0
    %140 = vmatpush1.bf16.msra.mxu0 0
    %141 = vmatprep.subr.bf16.mxu0 0
    %142 = vmatpush1.bf16.msra.mxu0 0
    %143 = vmatprep.subr.bf16.mxu0 0
    %144 = vmatpush1.bf16.msra.mxu0 0
    %145 = vmatprep.subr.bf16.mxu0 0
    %146 = vmatpush1.bf16.msra.mxu0 0
    %147 = vmatprep.subr.bf16.mxu0 0
    %148 = vmatpush1.bf16.msra.mxu0 0
    %149 = vmatprep.subr.bf16.mxu0 0
    %150 = vmatpush1.bf16.msra.mxu0 0
    %151 = vmatprep.subr.bf16.mxu0 0
    %152 = vmatpush1.bf16.msra.mxu0 0
    %153 = vmatprep.mubr.bf16.mxu0 0
    %154 = vmatmul.mubr.bf16.gmra.mrb[0].mxu0 %v49
    %v155 = vpop.f32.mrb[0].mxu0
    %v156 = vadd.f32 %v71, %v155
    %v157 = vpop.f32.mrb[0].mxu0
    %v158 = vpop.f32.mrb[0].mxu0
    %v159 = vpop.f32.mrb[0].mxu0
    %160 = vdwg.mxu0
    %v161 = vxor.u32 %v156, 2147483648
    %v162 = vmul.f32 %v161, 1.442695
    %v163 = vpow.pop %v162
    %v164 = vadd.f32 %v163, 1.0
    %v165 = vrcp.pop %v164
    %v166 = vmul.f32 1.0, %v165
    %v167 = vpack.c.bf16 %v166, %v166
    %v168 = vld [vmem:[#allocation4] sm:$0xff]
    %v169 = vld [vmem:[#allocation4 + $0x8] sm:$0xff]
    %v170 = vld [vmem:[#allocation4 + $0x10] sm:$0xff]
    %v171 = vld [vmem:[#allocation4 + $0x18] sm:$0xff]
    %v172 = vld [vmem:[#allocation4 + $0x20] sm:$0xff]
    %v173 = vld [vmem:[#allocation4 + $0x28] sm:$0xff]
    %v174 = vld [vmem:[#allocation4 + $0x30] sm:$0xff]
    %v175 = vld [vmem:[#allocation4 + $0x38] sm:$0xff]
    %v176 = vld [vmem:[#allocation4 + $0x40] sm:$0xff]
    %v177 = vld [vmem:[#allocation4 + $0x48] sm:$0xff]
    %v178 = vld [vmem:[#allocation4 + $0x50] sm:$0xff]
    %v179 = vld [vmem:[#allocation4 + $0x58] sm:$0xff]
    %v180 = vld [vmem:[#allocation4 + $0x60] sm:$0xff]
    %v181 = vld [vmem:[#allocation4 + $0x68] sm:$0xff]
    %v182 = vld [vmem:[#allocation4 + $0x70] sm:$0xff]
    %v183 = vld [vmem:[#allocation4 + $0x78] sm:$0xff]
    %v184 = vld [vmem:[#allocation4 + $0x80] sm:$0xff]
    %v185 = vld [vmem:[#allocation4 + $0x88] sm:$0xff]
    %v186 = vld [vmem:[#allocation4 + $0x90] sm:$0xff]
    %v187 = vld [vmem:[#allocation4 + $0x98] sm:$0xff]
    %v188 = vld [vmem:[#allocation4 + $0xa0] sm:$0xff]
    %v189 = vld [vmem:[#allocation4 + $0xa8] sm:$0xff]
    %v190 = vld [vmem:[#allocation4 + $0xb0] sm:$0xff]
    %v191 = vld [vmem:[#allocation4 + $0xb8] sm:$0xff]
    %v192 = vld [vmem:[#allocation4 + $0xc0] sm:$0xff]
    %v193 = vld [vmem:[#allocation4 + $0xc8] sm:$0xff]
    %v194 = vld [vmem:[#allocation4 + $0xd0] sm:$0xff]
    %v195 = vld [vmem:[#allocation4 + $0xd8] sm:$0xff]
    %v196 = vld [vmem:[#allocation4 + $0xe0] sm:$0xff]
    %v197 = vld [vmem:[#allocation4 + $0xe8] sm:$0xff]
    %v198 = vld [vmem:[#allocation4 + $0xf0] sm:$0xff]
    %v199 = vld [vmem:[#allocation4 + $0xf8] sm:$0xff]
    %v200 = vld [vmem:[#allocation4 + $0x100] sm:$0xff]
    %v201 = vld [vmem:[#allocation4 + $0x108] sm:$0xff]
    %v202 = vld [vmem:[#allocation4 + $0x110] sm:$0xff]
    %v203 = vld [vmem:[#allocation4 + $0x118] sm:$0xff]
    %v204 = vld [vmem:[#allocation4 + $0x120] sm:$0xff]
    %v205 = vld [vmem:[#allocation4 + $0x128] sm:$0xff]
    %v206 = vld [vmem:[#allocation4 + $0x130] sm:$0xff]
    %v207 = vld [vmem:[#allocation4 + $0x138] sm:$0xff]
    %v208 = vld [vmem:[#allocation4 + $0x140] sm:$0xff]
    %v209 = vld [vmem:[#allocation4 + $0x148] sm:$0xff]
    %v210 = vld [vmem:[#allocation4 + $0x150] sm:$0xff]
    %v211 = vld [vmem:[#allocation4 + $0x158] sm:$0xff]
    %v212 = vld [vmem:[#allocation4 + $0x160] sm:$0xff]
    %v213 = vld [vmem:[#allocation4 + $0x168] sm:$0xff]
    %v214 = vld [vmem:[#allocation4 + $0x170] sm:$0xff]
    %v215 = vld [vmem:[#allocation4 + $0x178] sm:$0xff]
    %v216 = vld [vmem:[#allocation4 + $0x180] sm:$0xff]
    %v217 = vld [vmem:[#allocation4 + $0x188] sm:$0xff]
    %v218 = vld [vmem:[#allocation4 + $0x190] sm:$0xff]
    %v219 = vld [vmem:[#allocation4 + $0x198] sm:$0xff]
    %v220 = vld [vmem:[#allocation4 + $0x1a0] sm:$0xff]
    %v221 = vld [vmem:[#allocation4 + $0x1a8] sm:$0xff]
    %v222 = vld [vmem:[#allocation4 + $0x1b0] sm:$0xff]
    %v223 = vld [vmem:[#allocation4 + $0x1b8] sm:$0xff]
    %v224 = vld [vmem:[#allocation4 + $0x1c0] sm:$0xff]
    %v225 = vld [vmem:[#allocation4 + $0x1c8] sm:$0xff]
    %v226 = vld [vmem:[#allocation4 + $0x1d0] sm:$0xff]
    %v227 = vld [vmem:[#allocation4 + $0x1d8] sm:$0xff]
    %v228 = vld [vmem:[#allocation4 + $0x1e0] sm:$0xff]
    %v229 = vld [vmem:[#allocation4 + $0x1e8] sm:$0xff]
    %v230 = vld [vmem:[#allocation4 + $0x1f0] sm:$0xff]
    %v231 = vld [vmem:[#allocation4 + $0x1f8] sm:$0xff]
    %v232 = vld [vmem:[%s4] sm:$0xff]
    %v234 = vlaneseq
    %v235 = vshrl.u32 %v234, 7
    %v236 = vsub.s32 0, %v235
    %v237 = vrot.slane %v232, %v236
    %v238 = vlaneseq
    %v239 = vshrl.u32 %v238, 7
    %v240 = vsub.s32 1, %v239
    %v241 = vrot.slane %v232, %v240
    %v242 = vlaneseq
    %v243 = vshrl.u32 %v242, 7
    %v244 = vsub.s32 2, %v243
    %v245 = vrot.slane %v232, %v244
    %v246 = vlaneseq
    %v247 = vshrl.u32 %v246, 7
    %v248 = vsub.s32 3, %v247
    %v249 = vrot.slane %v232, %v248
    %v250 = vlaneseq
    %v251 = vshrl.u32 %v250, 7
    %v252 = vsub.s32 4, %v251
    %v253 = vrot.slane %v232, %v252
    %v254 = vlaneseq
    %v255 = vshrl.u32 %v254, 7
    %v256 = vsub.s32 5, %v255
    %v257 = vrot.slane %v232, %v256
    %v258 = vlaneseq
    %v259 = vshrl.u32 %v258, 7
    %v260 = vsub.s32 6, %v259
    %v261 = vrot.slane %v232, %v260
    %v262 = vlaneseq
    %v263 = vshrl.u32 %v262, 7
    %v264 = vsub.s32 7, %v263
    %v265 = vrot.slane %v232, %v264
    %v338 = vunpack.c.l.b16 %v168
    %v339 = vunpack.c.h.b16 %v168
    %v340 = vunpack.c.l.b16 %v169
    %v341 = vunpack.c.h.b16 %v169
    %v342 = vunpack.c.l.b16 %v170
    %v343 = vunpack.c.h.b16 %v170
    %v344 = vunpack.c.l.b16 %v171
    %v345 = vunpack.c.h.b16 %v171
    %v346 = vunpack.c.l.b16 %v172
    %v347 = vunpack.c.h.b16 %v172
    %v348 = vunpack.c.l.b16 %v173
    %v349 = vunpack.c.h.b16 %v173
    %v350 = vunpack.c.l.b16 %v174
    %v351 = vunpack.c.h.b16 %v174
    %v352 = vunpack.c.l.b16 %v175
    %v353 = vunpack.c.h.b16 %v175
    %v354 = vunpack.c.l.b16 %v176
    %v355 = vunpack.c.h.b16 %v176
    %v356 = vunpack.c.l.b16 %v177
    %v357 = vunpack.c.h.b16 %v177
    %v358 = vunpack.c.l.b16 %v178
    %v359 = vunpack.c.h.b16 %v178
    %v360 = vunpack.c.l.b16 %v179
    %v361 = vunpack.c.h.b16 %v179
    %v362 = vunpack.c.l.b16 %v180
    %v363 = vunpack.c.h.b16 %v180
    %v364 = vunpack.c.l.b16 %v181
    %v365 = vunpack.c.h.b16 %v181
    %v366 = vunpack.c.l.b16 %v182
    %v367 = vunpack.c.h.b16 %v182
    %v368 = vunpack.c.l.b16 %v183
    %v369 = vunpack.c.h.b16 %v183
    %v370 = vunpack.c.l.b16 %v184
    %v371 = vunpack.c.h.b16 %v184
    %v372 = vunpack.c.l.b16 %v185
    %v373 = vunpack.c.h.b16 %v185
    %v374 = vunpack.c.l.b16 %v186
    %v375 = vunpack.c.h.b16 %v186
    %v376 = vunpack.c.l.b16 %v187
    %v377 = vunpack.c.h.b16 %v187
    %v378 = vunpack.c.l.b16 %v188
    %v379 = vunpack.c.h.b16 %v188
    %v380 = vunpack.c.l.b16 %v189
    %v381 = vunpack.c.h.b16 %v189
    %v382 = vunpack.c.l.b16 %v190
    %v383 = vunpack.c.h.b16 %v190
    %v384 = vunpack.c.l.b16 %v191
    %v385 = vunpack.c.h.b16 %v191
    %v386 = vunpack.c.l.b16 %v192
    %v387 = vunpack.c.h.b16 %v192
    %v388 = vunpack.c.l.b16 %v193
    %v389 = vunpack.c.h.b16 %v193
    %v390 = vunpack.c.l.b16 %v194
    %v391 = vunpack.c.h.b16 %v194
    %v392 = vunpack.c.l.b16 %v195
    %v393 = vunpack.c.h.b16 %v195
    %v394 = vunpack.c.l.b16 %v196
    %v395 = vunpack.c.h.b16 %v196
    %v396 = vunpack.c.l.b16 %v197
    %v397 = vunpack.c.h.b16 %v197
    %v398 = vunpack.c.l.b16 %v198
    %v399 = vunpack.c.h.b16 %v198
    %v400 = vunpack.c.l.b16 %v199
    %v401 = vunpack.c.h.b16 %v199
    %v402 = vunpack.c.l.b16 %v200
    %v403 = vunpack.c.h.b16 %v200
    %v404 = vunpack.c.l.b16 %v201
    %v405 = vunpack.c.h.b16 %v201
    %v406 = vunpack.c.l.b16 %v202
    %v407 = vunpack.c.h.b16 %v202
    %v408 = vunpack.c.l.b16 %v203
    %v409 = vunpack.c.h.b16 %v203
    %v410 = vunpack.c.l.b16 %v204
    %v411 = vunpack.c.h.b16 %v204
    %v412 = vunpack.c.l.b16 %v205
    %v413 = vunpack.c.h.b16 %v205
    %v414 = vunpack.c.l.b16 %v206
    %v415 = vunpack.c.h.b16 %v206
    %v416 = vunpack.c.l.b16 %v207
    %v417 = vunpack.c.h.b16 %v207
    %v418 = vunpack.c.l.b16 %v208
    %v419 = vunpack.c.h.b16 %v208
    %v420 = vunpack.c.l.b16 %v209
    %v421 = vunpack.c.h.b16 %v209
    %v422 = vunpack.c.l.b16 %v210
    %v423 = vunpack.c.h.b16 %v210
    %v424 = vunpack.c.l.b16 %v211
    %v425 = vunpack.c.h.b16 %v211
    %v426 = vunpack.c.l.b16 %v212
    %v427 = vunpack.c.h.b16 %v212
    %v428 = vunpack.c.l.b16 %v213
    %v429 = vunpack.c.h.b16 %v213
    %v430 = vunpack.c.l.b16 %v214
    %v431 = vunpack.c.h.b16 %v214
    %v432 = vunpack.c.l.b16 %v215
    %v433 = vunpack.c.h.b16 %v215
    %v434 = vunpack.c.l.b16 %v216
    %v435 = vunpack.c.h.b16 %v216
    %v436 = vunpack.c.l.b16 %v217
    %v437 = vunpack.c.h.b16 %v217
    %v438 = vunpack.c.l.b16 %v218
    %v439 = vunpack.c.h.b16 %v218
    %v440 = vunpack.c.l.b16 %v219
    %v441 = vunpack.c.h.b16 %v219
    %v442 = vunpack.c.l.b16 %v220
    %v443 = vunpack.c.h.b16 %v220
    %v444 = vunpack.c.l.b16 %v221
    %v445 = vunpack.c.h.b16 %v221
    %v446 = vunpack.c.l.b16 %v222
    %v447 = vunpack.c.h.b16 %v222
    %v448 = vunpack.c.l.b16 %v223
    %v449 = vunpack.c.h.b16 %v223
    %v450 = vunpack.c.l.b16 %v224
    %v451 = vunpack.c.h.b16 %v224
    %v452 = vunpack.c.l.b16 %v225
    %v453 = vunpack.c.h.b16 %v225
    %v454 = vunpack.c.l.b16 %v226
    %v455 = vunpack.c.h.b16 %v226
    %v456 = vunpack.c.l.b16 %v227
    %v457 = vunpack.c.h.b16 %v227
    %v458 = vunpack.c.l.b16 %v228
    %v459 = vunpack.c.h.b16 %v228
    %v460 = vunpack.c.l.b16 %v229
    %v461 = vunpack.c.h.b16 %v229
    %v462 = vunpack.c.l.b16 %v230
    %v463 = vunpack.c.h.b16 %v230
    %v464 = vunpack.c.l.b16 %v231
    %v465 = vunpack.c.h.b16 %v231
    %v466 = vpack.c.b16 %v346, %v338
    %v467 = vpack.c.b16 %v347, %v339
    %v468 = vpack.c.b16 %v348, %v340
    %v469 = vpack.c.b16 %v349, %v341
    %v470 = vpack.c.b16 %v350, %v342
    %v471 = vpack.c.b16 %v351, %v343
    %v472 = vpack.c.b16 %v352, %v344
    %v473 = vpack.c.b16 %v353, %v345
    %v474 = vpack.c.b16 %v362, %v354
    %v475 = vpack.c.b16 %v363, %v355
    %v476 = vpack.c.b16 %v364, %v356
    %v477 = vpack.c.b16 %v365, %v357
    %v478 = vpack.c.b16 %v366, %v358
    %v479 = vpack.c.b16 %v367, %v359
    %v480 = vpack.c.b16 %v368, %v360
    %v481 = vpack.c.b16 %v369, %v361
    %v482 = vpack.c.b16 %v378, %v370
    %v483 = vpack.c.b16 %v379, %v371
    %v484 = vpack.c.b16 %v380, %v372
    %v485 = vpack.c.b16 %v381, %v373
    %v486 = vpack.c.b16 %v382, %v374
    %v487 = vpack.c.b16 %v383, %v375
    %v488 = vpack.c.b16 %v384, %v376
    %v489 = vpack.c.b16 %v385, %v377
    %v490 = vpack.c.b16 %v394, %v386
    %v491 = vpack.c.b16 %v395, %v387
    %v492 = vpack.c.b16 %v396, %v388
    %v493 = vpack.c.b16 %v397, %v389
    %v494 = vpack.c.b16 %v398, %v390
    %v495 = vpack.c.b16 %v399, %v391
    %v496 = vpack.c.b16 %v400, %v392
    %v497 = vpack.c.b16 %v401, %v393
    %v498 = vpack.c.b16 %v410, %v402
    %v499 = vpack.c.b16 %v411, %v403
    %v500 = vpack.c.b16 %v412, %v404
    %v501 = vpack.c.b16 %v413, %v405
    %v502 = vpack.c.b16 %v414, %v406
    %v503 = vpack.c.b16 %v415, %v407
    %v504 = vpack.c.b16 %v416, %v408
    %v505 = vpack.c.b16 %v417, %v409
    %v506 = vpack.c.b16 %v426, %v418
    %v507 = vpack.c.b16 %v427, %v419
    %v508 = vpack.c.b16 %v428, %v420
    %v509 = vpack.c.b16 %v429, %v421
    %v510 = vpack.c.b16 %v430, %v422
    %v511 = vpack.c.b16 %v431, %v423
    %v512 = vpack.c.b16 %v432, %v424
    %v513 = vpack.c.b16 %v433, %v425
    %v514 = vpack.c.b16 %v442, %v434
    %v515 = vpack.c.b16 %v443, %v435
    %v516 = vpack.c.b16 %v444, %v436
    %v517 = vpack.c.b16 %v445, %v437
    %v518 = vpack.c.b16 %v446, %v438
    %v519 = vpack.c.b16 %v447, %v439
    %v520 = vpack.c.b16 %v448, %v440
    %v521 = vpack.c.b16 %v449, %v441
    %v522 = vpack.c.b16 %v458, %v450
    %v523 = vpack.c.b16 %v459, %v451
    %v524 = vpack.c.b16 %v460, %v452
    %v525 = vpack.c.b16 %v461, %v453
    %v526 = vpack.c.b16 %v462, %v454
    %v527 = vpack.c.b16 %v463, %v455
    %v528 = vpack.c.b16 %v464, %v456
    %v529 = vpack.c.b16 %v465, %v457
    %594 = vmatprep.subr.bf16.mxu0 %v467
    %595 = vmatpush1.bf16.msra.mxu0 %v466
    %596 = vmatprep.subr.bf16.mxu0 %v475
    %597 = vmatpush1.bf16.msra.mxu0 %v474
    %598 = vmatprep.subr.bf16.mxu0 %v483
    %599 = vmatpush1.bf16.msra.mxu0 %v482
    %600 = vmatprep.subr.bf16.mxu0 %v491
    %601 = vmatpush1.bf16.msra.mxu0 %v490
    %602 = vmatprep.subr.bf16.mxu0 %v499
    %603 = vmatpush1.bf16.msra.mxu0 %v498
    %604 = vmatprep.subr.bf16.mxu0 %v507
    %605 = vmatpush1.bf16.msra.mxu0 %v506
    %606 = vmatprep.subr.bf16.mxu0 %v515
    %607 = vmatpush1.bf16.msra.mxu0 %v514
    %608 = vmatprep.subr.bf16.mxu0 %v523
    %609 = vmatpush1.bf16.msra.mxu0 %v522
    %610 = vmatprep.subr.bf16.mxu0 0
    %611 = vmatpush1.bf16.msra.mxu0 0
    %612 = vmatprep.subr.bf16.mxu0 0
    %613 = vmatpush1.bf16.msra.mxu0 0
    %614 = vmatprep.subr.bf16.mxu0 0
    %615 = vmatpush1.bf16.msra.mxu0 0
    %616 = vmatprep.subr.bf16.mxu0 0
    %617 = vmatpush1.bf16.msra.mxu0 0
    %618 = vmatprep.subr.bf16.mxu0 0
    %619 = vmatpush1.bf16.msra.mxu0 0
    %620 = vmatprep.subr.bf16.mxu0 0
    %621 = vmatpush1.bf16.msra.mxu0 0
    %622 = vmatprep.subr.bf16.mxu0 0
    %623 = vmatpush1.bf16.msra.mxu0 0
    %624 = vmatprep.subr.bf16.mxu0 0
    %625 = vmatpush1.bf16.msra.mxu0 0
    %626 = vmatprep.mubr.bf16.mxu0 0
    %627 = vmatmul.mubr.bf16.gmra.mrb[0].mxu0 %v167
    %v628 = vpop.f32.mrb[0].mxu0
    %v629 = vadd.f32 %v237, %v628
    %v630 = vpop.f32.mrb[0].mxu0
    %v631 = vadd.f32 %v241, %v630
    %v632 = vpop.f32.mrb[0].mxu0
    %v633 = vpop.f32.mrb[0].mxu0
    %634 = vdwg.mxu0
    %635 = vmatprep.subr.bf16.mxu0 %v469
    %636 = vmatpush1.bf16.msra.mxu0 %v468
    %637 = vmatprep.subr.bf16.mxu0 %v477
    %638 = vmatpush1.bf16.msra.mxu0 %v476
    %639 = vmatprep.subr.bf16.mxu0 %v485
    %640 = vmatpush1.bf16.msra.mxu0 %v484
    %641 = vmatprep.subr.bf16.mxu0 %v493
    %642 = vmatpush1.bf16.msra.mxu0 %v492
    %643 = vmatprep.subr.bf16.mxu0 %v501
    %644 = vmatpush1.bf16.msra.mxu0 %v500
    %645 = vmatprep.subr.bf16.mxu0 %v509
    %646 = vmatpush1.bf16.msra.mxu0 %v508
    %647 = vmatprep.subr.bf16.mxu0 %v517
    %648 = vmatpush1.bf16.msra.mxu0 %v516
    %649 = vmatprep.subr.bf16.mxu0 %v525
    %650 = vmatpush1.bf16.msra.mxu0 %v524
    %651 = vmatprep.subr.bf16.mxu0 0
    %652 = vmatpush1.bf16.msra.mxu0 0
    %653 = vmatprep.subr.bf16.mxu0 0
    %654 = vmatpush1.bf16.msra.mxu0 0
    %655 = vmatprep.subr.bf16.mxu0 0
    %656 = vmatpush1.bf16.msra.mxu0 0
    %657 = vmatprep.subr.bf16.mxu0 0
    %658 = vmatpush1.bf16.msra.mxu0 0
    %659 = vmatprep.subr.bf16.mxu0 0
    %660 = vmatpush1.bf16.msra.mxu0 0
    %661 = vmatprep.subr.bf16.mxu0 0
    %662 = vmatpush1.bf16.msra.mxu0 0
    %663 = vmatprep.subr.bf16.mxu0 0
    %664 = vmatpush1.bf16.msra.mxu0 0
    %665 = vmatprep.subr.bf16.mxu0 0
    %666 = vmatpush1.bf16.msra.mxu0 0
    %667 = vmatprep.mubr.bf16.mxu0 0
    %668 = vmatmul.mubr.bf16.gmra.mrb[0].mxu0 %v167
    %v669 = vpop.f32.mrb[0].mxu0
    %v670 = vadd.f32 %v245, %v669
    %v671 = vpop.f32.mrb[0].mxu0
    %v672 = vadd.f32 %v249, %v671
    %v673 = vpop.f32.mrb[0].mxu0
    %v674 = vpop.f32.mrb[0].mxu0
    %675 = vdwg.mxu0
    %676 = vmatprep.subr.bf16.mxu0 %v471
    %677 = vmatpush1.bf16.msra.mxu0 %v470
    %678 = vmatprep.subr.bf16.mxu0 %v479
    %679 = vmatpush1.bf16.msra.mxu0 %v478
    %680 = vmatprep.subr.bf16.mxu0 %v487
    %681 = vmatpush1.bf16.msra.mxu0 %v486
    %682 = vmatprep.subr.bf16.mxu0 %v495
    %683 = vmatpush1.bf16.msra.mxu0 %v494
    %684 = vmatprep.subr.bf16.mxu0 %v503
    %685 = vmatpush1.bf16.msra.mxu0 %v502
    %686 = vmatprep.subr.bf16.mxu0 %v511
    %687 = vmatpush1.bf16.msra.mxu0 %v510
    %688 = vmatprep.subr.bf16.mxu0 %v519
    %689 = vmatpush1.bf16.msra.mxu0 %v518
    %690 = vmatprep.subr.bf16.mxu0 %v527
    %691 = vmatpush1.bf16.msra.mxu0 %v526
    %692 = vmatprep.subr.bf16.mxu0 0
    %693 = vmatpush1.bf16.msra.mxu0 0
    %694 = vmatprep.subr.bf16.mxu0 0
    %695 = vmatpush1.bf16.msra.mxu0 0
    %696 = vmatprep.subr.bf16.mxu0 0
    %697 = vmatpush1.bf16.msra.mxu0 0
    %698 = vmatprep.subr.bf16.mxu0 0
    %699 = vmatpush1.bf16.msra.mxu0 0
    %700 = vmatprep.subr.bf16.mxu0 0
    %701 = vmatpush1.bf16.msra.mxu0 0
    %702 = vmatprep.subr.bf16.mxu0 0
    %703 = vmatpush1.bf16.msra.mxu0 0
    %704 = vmatprep.subr.bf16.mxu0 0
    %705 = vmatpush1.bf16.msra.mxu0 0
    %706 = vmatprep.subr.bf16.mxu0 0
    %707 = vmatpush1.bf16.msra.mxu0 0
    %708 = vmatprep.mubr.bf16.mxu0 0
    %709 = vmatmul.mubr.bf16.gmra.mrb[0].mxu0 %v167
    %v710 = vpop.f32.mrb[0].mxu0
    %v711 = vadd.f32 %v253, %v710
    %v712 = vpop.f32.mrb[0].mxu0
    %v713 = vadd.f32 %v257, %v712
    %v714 = vpop.f32.mrb[0].mxu0
    %v715 = vpop.f32.mrb[0].mxu0
    %716 = vdwg.mxu0
    %717 = vmatprep.subr.bf16.mxu0 %v473
    %718 = vmatpush1.bf16.msra.mxu0 %v472
    %719 = vmatprep.subr.bf16.mxu0 %v481
    %720 = vmatpush1.bf16.msra.mxu0 %v480
    %721 = vmatprep.subr.bf16.mxu0 %v489
    %722 = vmatpush1.bf16.msra.mxu0 %v488
    %723 = vmatprep.subr.bf16.mxu0 %v497
    %724 = vmatpush1.bf16.msra.mxu0 %v496
    %725 = vmatprep.subr.bf16.mxu0 %v505
    %726 = vmatpush1.bf16.msra.mxu0 %v504
    %727 = vmatprep.subr.bf16.mxu0 %v513
    %728 = vmatpush1.bf16.msra.mxu0 %v512
    %729 = vmatprep.subr.bf16.mxu0 %v521
    %730 = vmatpush1.bf16.msra.mxu0 %v520
    %731 = vmatprep.subr.bf16.mxu0 %v529
    %732 = vmatpush1.bf16.msra.mxu0 %v528
    %733 = vmatprep.subr.bf16.mxu0 0
    %734 = vmatpush1.bf16.msra.mxu0 0
    %735 = vmatprep.subr.bf16.mxu0 0
    %736 = vmatpush1.bf16.msra.mxu0 0
    %737 = vmatprep.subr.bf16.mxu0 0
    %738 = vmatpush1.bf16.msra.mxu0 0
    %739 = vmatprep.subr.bf16.mxu0 0
    %740 = vmatpush1.bf16.msra.mxu0 0
    %741 = vmatprep.subr.bf16.mxu0 0
    %742 = vmatpush1.bf16.msra.mxu0 0
    %743 = vmatprep.subr.bf16.mxu0 0
    %744 = vmatpush1.bf16.msra.mxu0 0
    %745 = vmatprep.subr.bf16.mxu0 0
    %746 = vmatpush1.bf16.msra.mxu0 0
    %747 = vmatprep.subr.bf16.mxu0 0
    %748 = vmatpush1.bf16.msra.mxu0 0
    %749 = vmatprep.mubr.bf16.mxu0 0
    %750 = vmatmul.mubr.bf16.gmra.mrb[0].mxu0 %v167
    %v751 = vpop.f32.mrb[0].mxu0
    %v752 = vadd.f32 %v261, %v751
    %v753 = vpop.f32.mrb[0].mxu0
    %v754 = vadd.f32 %v265, %v753
    %v755 = vpop.f32.mrb[0].mxu0
    %v756 = vpop.f32.mrb[0].mxu0
    %757 = vdwg.mxu0
    %v758 = vxor.u32 %v629, 2147483648
    %v759 = vxor.u32 %v631, 2147483648
    %v760 = vxor.u32 %v670, 2147483648
    %v761 = vxor.u32 %v672, 2147483648
    %v762 = vxor.u32 %v711, 2147483648
    %v763 = vxor.u32 %v713, 2147483648
    %v764 = vxor.u32 %v752, 2147483648
    %v765 = vxor.u32 %v754, 2147483648
    %v766 = vmul.f32 %v758, 1.442695
    %v767 = vpow.pop %v766
    %v768 = vmul.f32 %v759, 1.442695
    %v769 = vpow.pop %v768
    %v770 = vmul.f32 %v760, 1.442695
    %v771 = vpow.pop %v770
    %v772 = vmul.f32 %v761, 1.442695
    %v773 = vpow.pop %v772
    %v774 = vmul.f32 %v762, 1.442695
    %v775 = vpow.pop %v774
    %v776 = vmul.f32 %v763, 1.442695
    %v777 = vpow.pop %v776
    %v778 = vmul.f32 %v764, 1.442695
    %v779 = vpow.pop %v778
    %v780 = vmul.f32 %v765, 1.442695
    %v781 = vpow.pop %v780
    %v782 = vadd.f32 %v767, 1.0
    %v783 = vadd.f32 %v769, 1.0
    %v784 = vadd.f32 %v771, 1.0
    %v785 = vadd.f32 %v773, 1.0
    %v786 = vadd.f32 %v775, 1.0
    %v787 = vadd.f32 %v777, 1.0
    %v788 = vadd.f32 %v779, 1.0
    %v789 = vadd.f32 %v781, 1.0
    %v790 = vrcp.pop %v782
    %v791 = vmul.f32 1.0, %v790
    %v792 = vrcp.pop %v783
    %v793 = vmul.f32 1.0, %v792
    %v794 = vrcp.pop %v784
    %v795 = vmul.f32 1.0, %v794
    %v796 = vrcp.pop %v785
    %v797 = vmul.f32 1.0, %v796
    %v798 = vrcp.pop %v786
    %v799 = vmul.f32 1.0, %v798
    %v800 = vrcp.pop %v787
    %v801 = vmul.f32 1.0, %v800
    %v802 = vrcp.pop %v788
    %v803 = vmul.f32 1.0, %v802
    %v804 = vrcp.pop %v789
    %v805 = vmul.f32 1.0, %v804
    %v814 = vcombine.low %v791, %v793
    %v815 = vcombine.low %v795, %v797
    %v817 = vunpack.c.l.s4 1983009808
    %v818 = vunpack.c.0.s8 %v817
    %v819 = vlaneseq
    %v820 = vshrl.u32 %v819, 7
    %v821 = vsub.s32 %v818, %v820
    %v822 = vrot.slane %v814, %v821
    %v824 = vunpack.c.l.s4 1983009808
    %v825 = vunpack.c.0.s8 %v824
    %v826 = vlaneseq
    %v827 = vshrl.u32 %v826, 7
    %v828 = vsub.s32 %v825, %v827
    %v829 = vrot.slane %v815, %v828
    %v830 = vcombine.low %v822, %v829
    %v831 = vcombine.low %v799, %v801
    %v832 = vcombine.low %v803, %v805
    %v834 = vunpack.c.l.s4 1983009808
    %v835 = vunpack.c.0.s8 %v834
    %v836 = vlaneseq
    %v837 = vshrl.u32 %v836, 7
    %v838 = vsub.s32 %v835, %v837
    %v839 = vrot.slane %v831, %v838
    %v841 = vunpack.c.l.s4 1983009808
    %v842 = vunpack.c.0.s8 %v841
    %v843 = vlaneseq
    %v844 = vshrl.u32 %v843, 7
    %v845 = vsub.s32 %v842, %v844
    %v846 = vrot.slane %v832, %v845
    %v847 = vcombine.low %v839, %v846
    %850 = vst [vmem:[%s5] sm:$0xff] %v830
    %851 = vst [vmem:[%s5 + $0x8] sm:$0xff] %v847
    // Predicated region
    $region30: #{forhead.1} parent=1 // pred_check
      _
    $region31: #{forhead.1} parent=1 // pred_check_branch
      %853 = sbr.rel (0) target = $region33
    $region32: #{forhead.1} parent=1 // pred_region
      _
    $region33: #{forhead.1} parent=1 // pred_fallthru
      _
    // Predicated region
    $region34: #{forhead.1} parent=1 // pred_check
      _
    $region35: #{forhead.1} parent=1 // pred_check_branch
      %855 = sbr.rel (0) target = $region37
    $region36: #{forhead.1} parent=1 // pred_region
      _
    $region37: #{forhead.1} parent=1 // pred_fallthru
      _
    %856 = vsyncpa [#allocation3], 1
    %857 = vsyncpa [#allocation5], 1

</llo_original>
